<compile_context>
chip_gen: v7x
topology: tpu7x:2x2x1
jax: 0.10.0
libtpu: 0.0.40
codegen_flags: <defaults>
</compile_context>

<pallas_src>
import functools

import jax
import jax.numpy as jnp
from jax.experimental import pallas as pl
from jax.experimental.pallas import tpu as pltpu

_LANE = 128


def _pact_kernel(alpha_ref, x_ref, o_ref):
    # alpha_ref: (1,) f32 scalar in SMEM (kept as a ref so alpha may be a traced
    # learnable array); x_ref / o_ref: (block_rows, width) VMEM tiles.
    alpha = alpha_ref[0].astype(x_ref.dtype)
    x = x_ref[...]
    zero = jnp.zeros((), dtype=x_ref.dtype)
    # clamp(x, 0, alpha) as max + min: two single-slot VPU ops per vreg.
    o_ref[...] = jnp.minimum(jnp.maximum(x, zero), alpha).astype(o_ref.dtype)


@functools.lru_cache(maxsize=None)
def _tiling_plan():
    """Per-generation (block_bytes, vmem_limit_bytes, tensorcores_per_chip)."""
    kind = ""
    try:
        kind = jax.devices()[0].device_kind.lower()
    except Exception:
        pass
    if "v7" in kind or "tpu7" in kind or "tpu 7" in kind:
        # v7x: 64 MiB VMEM, ~3.2 TB/s, 2 TCs.  8 MiB blocks => 32 MiB of
        # double-buffered in+out, so raise the scoped-VMEM limit past 32 MiB.
        return 8 << 20, 48 << 20, 2
    if "v6" in kind:
        # v6e: 4 MiB blocks => 16 MiB footprint, under the 32 MiB scoped default.
        return 4 << 20, None, 1
    if "v5" in kind:
        # v5e: stay safely under the 16 MiB scoped default.
        return 3 << 20, None, 1
    return 2 << 20, None, 1  # unknown generation: conservative, always fits


def _choose_width(n_bulk):
    """Widest lane-dense last dim that divides n_bulk (n_bulk % 128 == 0)."""
    for width in (1024, 512, 256, 128):
        if n_bulk % width == 0:
            return width
    return _LANE  # unreachable


def _clamp_small(v, alpha, dtype):
    zero = jnp.zeros((), dtype=dtype)
    return jnp.minimum(jnp.maximum(v, zero), alpha.astype(dtype))


def _pact_impl(x, alpha_arr):
    orig_shape = x.shape
    dtype = x.dtype
    itemsize = jnp.dtype(dtype).itemsize
    n = x.size

    flat = x.reshape(-1)

    # Bulk = largest multiple-of-128 prefix; tiny (<128 elem) tail is clamped
    # outside the kernel so we never pad + re-slice the full tensor.
    n_bulk = n - (n % _LANE)
    if n_bulk == 0:
        return _clamp_small(flat, alpha_arr[0], dtype).reshape(orig_shape)

    bulk = flat if n_bulk == n else flat[:n_bulk]
    width = _choose_width(n_bulk)
    rows = n_bulk // width
    x2d = bulk.reshape(rows, width)

    block_bytes, vmem_limit, num_cores = _tiling_plan()

    # Native sublane multiple for this dtype (8 f32 / 16 bf16 / 32 int8-fp8):
    # keeps stores full unmasked vst on sub-32-bit dtypes.
    sub = max(8, 32 // itemsize)
    block_rows = max(sub, (block_bytes // (width * itemsize)) // sub * sub)
    if block_rows >= rows:
        if num_cores > 1 and rows >= 2 * sub:
            # v7x: split a would-be single-block tensor across both TensorCores.
            block_rows = pl.cdiv(pl.cdiv(rows, num_cores), sub) * sub
            if block_rows >= rows:
                block_rows = rows
        else:
            block_rows = rows  # full-extent block is always legal
    grid = pl.cdiv(rows, block_rows)  # ragged last block handled by masked writes

    # NOTE: input_output_aliases={1: 0} would let XLA reuse x2d's buffer when the
    # caller donates x; left off so the demo keeps x alive for the reference check.
    out2d = pl.pallas_call(
        _pact_kernel,
        out_shape=jax.ShapeDtypeStruct((rows, width), dtype),
        grid=(grid,),
        in_specs=[
            pl.BlockSpec(memory_space=pltpu.SMEM),                 # alpha scalar
            pl.BlockSpec((block_rows, width), lambda i: (i, 0)),   # x block
        ],
        out_specs=pl.BlockSpec((block_rows, width), lambda i: (i, 0)),
        compiler_params=pltpu.CompilerParams(
            dimension_semantics=("parallel",),
            vmem_limit_bytes=vmem_limit),
        cost_estimate=pl.CostEstimate(
            flops=2 * n_bulk,
            transcendentals=0,
            bytes_accessed=2 * n_bulk * itemsize + 4),
    )(alpha_arr, x2d)

    out = out2d.reshape(-1)
    if n_bulk != n:
        tail = _clamp_small(flat[n_bulk:], alpha_arr[0], dtype)
        out = jnp.concatenate([out, tail])
    return out.reshape(orig_shape)


# jit so the reshapes are metadata-only and the kernel fuses with its neighbors.
_pact_jit = jax.jit(_pact_impl)


def pact_forward(x, alpha=5.0):
    """PACT activation forward: y = clamp(x, 0.0, alpha). x: any shape."""
    alpha_arr = jnp.asarray(alpha, dtype=jnp.float32).reshape(1)
    return _pact_jit(x, alpha_arr)
    # TODO(synk): backward (straight-through grad + grad_alpha reduction) not
    # implemented; this kernel covers the PACT.forward pass only.


if __name__ == "__main__":
    key = jax.random.PRNGKey(0)
    # NCHW input; values spread so clamping at both 0 and alpha=5 kicks in.
    x = jax.random.normal(key, (2, 4, 16, 16), dtype=jnp.float32) * 4.0

    y = pact_forward(x, alpha=5.0)
    y = jax.block_until_ready(y)

    y_ref = jnp.clip(x, 0.0, 5.0)
    assert y.shape == x.shape and y.dtype == x.dtype
    assert jnp.array_equal(y, y_ref), "mismatch vs reference"
    print("KERNEL_OK")
</pallas_src>

<mosaic_0001>
module attributes {stable_mosaic.version = 11 : i64} {
  func.func @_pact_kernel(%arg0: i32, %arg1: memref<1xf32, #tpu.memory_space<smem>>, %arg2: memref<2x1024xf32, #tpu.memory_space<vmem>>, %arg3: memref<2x1024xf32, #tpu.memory_space<vmem>>) attributes {dimension_semantics = [#tpu.dimension_semantics<parallel>], iteration_bounds = array<i64: 1>, scalar_prefetch = 0 : i64, scratch_operands = 0 : i64, tpu.core_type = #tpu.core_type<tc>, window_params = [{transform_indices = @transform_0, window_bounds = array<i64: 1>}, {transform_indices = @transform_1, window_bounds = array<i64: 2, 1024>}, {transform_indices = @transform_2, window_bounds = array<i64: 2, 1024>}]} {
    %c0 = arith.constant 0 : index
    %0 = memref.load %arg1[%c0] : memref<1xf32, #tpu.memory_space<smem>>
    %c0_0 = arith.constant 0 : index
    %c0_1 = arith.constant 0 : index
    %1 = vector.load %arg2[%c0_0, %c0_1] : memref<2x1024xf32, #tpu.memory_space<vmem>>, vector<2x1024xf32>
    %cst = arith.constant 0.000000e+00 : f32
    %2 = vector.broadcast %cst : f32 to vector<2x1024xf32>
    %3 = arith.maximumf %1, %2 : vector<2x1024xf32>
    %4 = vector.broadcast %0 : f32 to vector<2x1024xf32>
    %5 = arith.minimumf %3, %4 : vector<2x1024xf32>
    %c0_2 = arith.constant 0 : index
    %c0_3 = arith.constant 0 : index
    %6 = vector.load %arg3[%c0_2, %c0_3] : memref<2x1024xf32, #tpu.memory_space<vmem>>, vector<2x1024xf32>
    tpu.vector_store %arg3[%c0_2, %c0_3], %5 {strides = array<i32>} : memref<2x1024xf32, #tpu.memory_space<vmem>>, vector<2x1024xf32>,
    return
  }
  func.func @transform_0(%arg0: i32) -> i32 {
    %c0_i32 = arith.constant 0 : i32
    %c0_i32_0 = arith.constant 0 : i32
    return %c0_i32 : i32
  }
  func.func @transform_1(%arg0: i32) -> (i32, i32) {
    %c0_i32 = arith.constant 0 : i32
    %c0_i32_0 = arith.constant 0 : i32
    return %arg0, %c0_i32 : i32, i32
  }
  func.func @transform_2(%arg0: i32) -> (i32, i32) {
    %c0_i32 = arith.constant 0 : i32
    %c0_i32_0 = arith.constant 0 : i32
    return %arg0, %c0_i32 : i32, i32
  }
}

</mosaic_0001>

<llo_original>
// kernel: _pact_impl.1
$region0: #{_pact_impl.1}
  #allocation0 [shape = 'u32[]', space=smem, size = 0x4, offset = 0x4, fixed_abs, tag = 'smem constant byte address 0x4 - core index']
  #allocation1 [shape = 'u32[144,128]{1,0:T(1,128)}', space=vmem, size = 0x12000, scoped, tag = 'internal scratch']
  #allocation2 [shape = 'f32[1]{0:T(128)S(6)}', space=smem, size = 0x200, scoped, tag = 'scoped memory for _pact_impl.1']
  %s0 = inlined_call_operand.<no memory space> [shape: f32[1], index: 0, kind: input, shape index: {}]
  %s1 = inlined_call_operand.vmem [shape: f32[2,1024], index: 1, kind: input, shape index: {}]
  %s2 = inlined_call_operand.vmem [shape: f32[2,1024], index: 2, kind: output, shape index: {}]
  %s3 = sld [smem:[#allocation0]]
  $region18: #{_pact_impl.1} parent=0
    _
  %s5 = ssub.s32 1, %s3
  %s6 = scalar_select 0, %s5, %s3
  %7 = sst [smem:[#allocation2]] %s0
  // Predicated region
  $region2: #{_pact_impl.1} parent=0 // pred_check
    _
  $region3: #{_pact_impl.1} parent=0 // pred_check_branch
    %9 = sbr.rel (0) target = $region5
  $region4: #{_pact_impl.1} parent=0 // pred_region
    _
  $region5: #{_pact_impl.1} parent=0 // pred_fallthru
    _
  // Predicated region
  $region6: #{_pact_impl.1} parent=0 // pred_check
    _
  $region7: #{_pact_impl.1} parent=0 // pred_check_branch
    %11 = sbr.rel (0) target = $region9
  $region8: #{_pact_impl.1} parent=0 // pred_region
    _
  $region9: #{_pact_impl.1} parent=0 // pred_fallthru
    _
  %s12 = sld [smem:[#allocation2]]
  %v13 = vld [vmem:[%s1] sm:$0xff]
  %v14 = vld [vmem:[%s1 + $0x8] sm:$0xff]
  %v15 = vmax.f32 %v13, 0.0
  %v16 = vmax.f32 %v14, 0.0
  %v17 = vstv %s12
  %v18 = vmin.f32 %v15, %v17
  %v19 = vmin.f32 %v16, %v17
  %20 = vst [vmem:[%s2] sm:$0xff] %v18
  %21 = vst [vmem:[%s2 + $0x8] sm:$0xff] %v19
  // Predicated region
  $region10: #{_pact_impl.1} parent=0 // pred_check
    _
  $region11: #{_pact_impl.1} parent=0 // pred_check_branch
    %23 = sbr.rel (0) target = $region13
  $region12: #{_pact_impl.1} parent=0 // pred_region
    _
  $region13: #{_pact_impl.1} parent=0 // pred_fallthru
    _
  // Predicated region
  $region14: #{_pact_impl.1} parent=0 // pred_check
    _
  $region15: #{_pact_impl.1} parent=0 // pred_check_branch
    %25 = sbr.rel (0) target = $region17
  $region16: #{_pact_impl.1} parent=0 // pred_region
    _
  $region17: #{_pact_impl.1} parent=0 // pred_fallthru
    _

</llo_original>
